<compile_context>
chip_gen: v5e
topology: v5e:2x2
jax: 0.10.0
libtpu: 0.0.40
codegen_flags: <defaults>
</compile_context>

<pallas_src>
import functools

import jax
import jax.numpy as jnp
from jax.experimental import pallas as pl
from jax.experimental.pallas import tpu as pltpu

LANES = 128


def _cdiv(a, b):
    return -(-a // b)


def _default_tile_rows():
    """Row tile sized to the chip's default scoped-VMEM budget."""
    try:
        kind = jax.devices()[0].device_kind.lower()
    except Exception:
        kind = ""
    if "v5" in kind:
        # v5e default scoped VMEM is 16 MiB: 2 inputs x 2 buffers x 2 MiB = 8 MiB.
        return 4096
    # v6e / v7x: 32 MiB scoped default -> 2 x 2 x 4 MiB = 16 MiB live.
    return 8192


def _static_int_pow(v, n):
    """v**n for a static positive python int n, as a pure mul chain."""
    result = None
    base = v
    while n:
        if n & 1:
            result = base if result is None else result * base
        n >>= 1
        if n:
            base = base * base
    return result


def _focal_loss_kernel(x_ref, t_ref, o_ref, *, gamma, tile_rows, num_blocks,
                       valid_rows_last, has_ragged, assume_binary_targets):
    i = pl.program_id(0)

    @pl.when(i == 0)
    def _init():
        o_ref[...] = jnp.zeros_like(o_ref)

    x = x_ref[...].astype(jnp.float32)
    t = t_ref[...].astype(jnp.float32)

    # Stable BCE-with-logits, algebraically identical to the PyTorch formula:
    #   x - x*t + max(-x,0) + log(exp(-max_val) + exp(-x-max_val))
    #     == max(x,0) - x*t + log1p(exp(-|x|))
    e_x = jnp.exp(-jnp.abs(x))
    loss = jnp.maximum(x, 0.0) - x * t + jnp.log1p(e_x)

    # Focal weight: exp(gamma * logsigmoid(z)) with z = -x*(2t-1).
    z = -x * (t * 2.0 - 1.0)
    if assume_binary_targets:
        e_z = e_x                      # |z| == |x| exactly when t in {0, 1}
    else:
        e_z = jnp.exp(-jnp.abs(z))

    g = float(gamma)
    if g == 0.0:
        focal = None
    elif g > 0.0 and g.is_integer() and g <= 64.0:
        # sigmoid(z)**gamma: select + reciprocal + static mul chain
        # (no exp(invprobs*gamma), no second log1p in the general path).
        sig = jnp.where(z >= 0.0, 1.0, e_z) * pl.reciprocal(1.0 + e_z)
        focal = _static_int_pow(sig, int(g))
    else:
        invprobs = jnp.minimum(z, 0.0) - jnp.log1p(e_z)
        focal = jnp.exp(invprobs * g)
    if focal is not None:
        loss = focal * loss

    def _accumulate(vals):
        # Pure VPU adds into the resident (8,128) output block.
        full = (tile_rows // 8) * 8
        if full:
            o_ref[...] += vals[:full].reshape(full // 8, 8, LANES).sum(axis=0)
        rem = tile_rows - full          # only nonzero for tiny single-block inputs
        if rem:
            o_ref[0:rem, :] += vals[full:, :]

    if has_ragged:
        # Only the very last block contains out-of-bounds (unspecified) rows;
        # gate the mask there so the iota/compare never runs on the hot path.
        @pl.when(i < num_blocks - 1)
        def _full_block():
            _accumulate(loss)

        @pl.when(i == num_blocks - 1)
        def _ragged_block():
            row = jax.lax.broadcasted_iota(jnp.int32, (tile_rows, LANES), 0)
            # jnp.where *selection*: garbage (possibly Inf/NaN) cannot propagate.
            _accumulate(jnp.where(row < valid_rows_last, loss, 0.0))
    else:
        _accumulate(loss)


def _focal_elementwise_jnp(x, t, gamma):
    """Plain-jnp elementwise focal loss (used for the <128-element tail)."""
    x = x.astype(jnp.float32)
    t = t.astype(jnp.float32)
    e_x = jnp.exp(-jnp.abs(x))
    loss = jnp.maximum(x, 0.0) - x * t + jnp.log1p(e_x)
    z = -x * (t * 2.0 - 1.0)
    invprobs = jnp.minimum(z, 0.0) - jnp.log1p(jnp.exp(-jnp.abs(z)))
    return jnp.exp(invprobs * gamma) * loss


def focal_loss(inputs, targets, gamma, *, tile_rows=None,
               assume_binary_targets=False):
    """Pallas focal loss.  Returns a scalar float32 (mean over all elements).

    `inputs` / `targets` may be any float/int dtype; they are upcast to f32
    inside the kernel, so callers can pass bf16 logits / int8-bool targets to
    cut HBM traffic.  assume_binary_targets=True is a bit-exact shortcut when
    targets only contain 0.0 / 1.0.
    """
    if inputs.shape != targets.shape:
        raise ValueError(
            "Target size ({}) must be the same as input size ({})".format(
                targets.shape, inputs.shape))
    total_n = int(inputs.size)
    if total_n == 0:
        return jnp.float32(jnp.nan)   # mean of empty tensor

    x_flat = inputs.reshape(-1)
    t_flat = targets.reshape(-1)

    rows = total_n // LANES           # full 128-lane rows handled by the kernel
    tail = total_n - rows * LANES     # <128 leftover elements handled in jnp

    total_sum = jnp.float32(0.0)

    if rows > 0:
        if tile_rows is None:
            tile_rows = _default_tile_rows()
        tile_rows = min(int(tile_rows), rows)   # <= rows: block never exceeds dim
        num_blocks = _cdiv(rows, tile_rows)
        valid_rows_last = rows - (num_blocks - 1) * tile_rows
        has_ragged = valid_rows_last != tile_rows

        # Free reshapes; the prefix slice is a no-op when tail == 0 (the common,
        # 128-divisible case) so no extra HBM copy is made.
        x2 = x_flat[:rows * LANES].reshape(rows, LANES)
        t2 = t_flat[:rows * LANES].reshape(rows, LANES)

        kernel = functools.partial(
            _focal_loss_kernel,
            gamma=float(gamma),
            tile_rows=tile_rows,
            num_blocks=num_blocks,
            valid_rows_last=valid_rows_last,
            has_ragged=has_ragged,
            assume_binary_targets=bool(assume_binary_targets),
        )

        partials = pl.pallas_call(
            kernel,
            out_shape=jax.ShapeDtypeStruct((8, LANES), jnp.float32),
            grid_spec=pltpu.PrefetchScalarGridSpec(
                num_scalar_prefetch=0,
                grid=(num_blocks,),
                in_specs=[
                    pl.BlockSpec((tile_rows, LANES), lambda i: (i, 0)),
                    pl.BlockSpec((tile_rows, LANES), lambda i: (i, 0)),
                ],
                # Constant index_map -> output block stays resident in VMEM
                # across the whole reduction (accumulated in-kernel).
                out_specs=pl.BlockSpec((8, LANES), lambda i: (0, 0)),
            ),
            compiler_params=pltpu.CompilerParams(
                dimension_semantics=("arbitrary",),
            ),
        )(x2, t2)
        total_sum = total_sum + jnp.sum(partials)

    if tail:
        total_sum = total_sum + jnp.sum(
            _focal_elementwise_jnp(x_flat[rows * LANES:],
                                   t_flat[rows * LANES:], float(gamma)))

    return total_sum / jnp.float32(total_n)


def _focal_loss_ref(inputs, targets, gamma):
    """Direct jnp translation of the PyTorch module (reference)."""
    x = inputs.astype(jnp.float32)
    t = targets.astype(jnp.float32)
    max_val = jnp.maximum(-x, 0.0)
    loss = x - x * t + max_val + jnp.log(jnp.exp(-max_val) + jnp.exp(-x - max_val))
    invprobs = jax.nn.log_sigmoid(-x * (t * 2.0 - 1.0))
    loss = jnp.exp(invprobs * gamma) * loss
    return jnp.mean(loss)


if __name__ == "__main__":
    gamma = 2.0  # deterministic "parameter" of the module

    key = jax.random.PRNGKey(0)
    k1, k2, k3, k4, k5, k6 = jax.random.split(key, 6)

    # 1) NCHW input, 128-divisible element count, exact 0/1 targets
    #    (binary fast path is bit-exact here).  No padding, no copies.
    x = jax.random.normal(k1, (2, 4, 16, 16), dtype=jnp.float32)
    tgt = (jax.random.uniform(k2, (2, 4, 16, 16)) > 0.5).astype(jnp.float32)
    out = jax.block_until_ready(focal_loss(x, tgt, gamma,
                                           assume_binary_targets=True))
    ref = _focal_loss_ref(x, tgt, gamma)
    assert jnp.allclose(out, ref, rtol=1e-5, atol=1e-5), (out, ref)

    # 2) Non-128-divisible element count + soft (non-binary) targets:
    #    exercises the jnp tail path and the <8-row accumulate path.
    x2 = jax.random.normal(k3, (3, 5, 7, 11), dtype=jnp.float32)
    t2 = jax.random.uniform(k4, (3, 5, 7, 11), dtype=jnp.float32)
    out2 = jax.block_until_ready(focal_loss(x2, t2, gamma))
    ref2 = _focal_loss_ref(x2, t2, gamma)
    assert jnp.allclose(out2, ref2, rtol=1e-5, atol=1e-5), (out2, ref2)

    # 3) Multi-block grid with a ragged final block (rows=320, tile=128):
    #    exercises accumulator init / pl.when-gated masking.
    x3 = jax.random.normal(k5, (2, 4, 40, 128), dtype=jnp.float32)
    t3 = jax.random.uniform(k6, (2, 4, 40, 128), dtype=jnp.float32)
    out3 = jax.block_until_ready(focal_loss(x3, t3, gamma, tile_rows=128))
    ref3 = _focal_loss_ref(x3, t3, gamma)
    assert jnp.allclose(out3, ref3, rtol=1e-5, atol=1e-5), (out3, ref3)

    print("KERNEL_OK")
</pallas_src>

<mosaic_0001>
module attributes {stable_mosaic.version = 11 : i64} {
  func.func @_focal_loss_kernel(%arg0: i32, %arg1: memref<16x128xf32, #tpu.memory_space<vmem>>, %arg2: memref<16x128xf32, #tpu.memory_space<vmem>>, %arg3: memref<8x128xf32, #tpu.memory_space<vmem>>) attributes {dimension_semantics = [#tpu.dimension_semantics<arbitrary>], iteration_bounds = array<i64: 1>, scalar_prefetch = 0 : i64, scratch_operands = 0 : i64, tpu.core_type = #tpu.core_type<tc>, window_params = [{transform_indices = @transform_0, window_bounds = array<i64: 16, 128>}, {transform_indices = @transform_1, window_bounds = array<i64: 16, 128>}, {pipeline_mode = #tpu.pipeline_mode<synchronous>, transform_indices = @transform_2, window_bounds = array<i64: 8, 128>}]} {
    %c0_i32 = arith.constant 0 : i32
    %0 = arith.cmpi eq, %arg0, %c0_i32 : i32
    %1 = arith.extui %0 : i1 to i32
    %c0_i32_0 = arith.constant 0 : i32
    %2 = arith.cmpi ne, %1, %c0_i32_0 : i32
    scf.if %2 {
      %cst_16 = arith.constant 0.000000e+00 : f32
      %37 = vector.broadcast %cst_16 : f32 to vector<8x128xf32>
      %c0_17 = arith.constant 0 : index
      %c0_18 = arith.constant 0 : index
      %38 = vector.load %arg3[%c0_17, %c0_18] : memref<8x128xf32, #tpu.memory_space<vmem>>, vector<8x128xf32>
      tpu.vector_store %arg3[%c0_17, %c0_18], %37 {strides = array<i32>} : memref<8x128xf32, #tpu.memory_space<vmem>>, vector<8x128xf32>,
    } else {
    }
    %c0 = arith.constant 0 : index
    %c0_1 = arith.constant 0 : index
    %3 = vector.load %arg1[%c0, %c0_1] : memref<16x128xf32, #tpu.memory_space<vmem>>, vector<16x128xf32>
    %c0_2 = arith.constant 0 : index
    %c0_3 = arith.constant 0 : index
    %4 = vector.load %arg2[%c0_2, %c0_3] : memref<16x128xf32, #tpu.memory_space<vmem>>, vector<16x128xf32>
    %5 = math.absf %3 : vector<16x128xf32>
    %cst = arith.constant 0.000000e+00 : f32
    %6 = vector.broadcast %cst : f32 to vector<16x128xf32>
    %7 = arith.subf %6, %5 : vector<16x128xf32>
    %8 = math.exp %7 : vector<16x128xf32>
    %cst_4 = arith.constant 0.000000e+00 : f32
    %9 = vector.broadcast %cst_4 : f32 to vector<16x128xf32>
    %10 = arith.maximumf %3, %9 : vector<16x128xf32>
    %11 = arith.mulf %3, %4 : vector<16x128xf32>
    %12 = arith.subf %10, %11 : vector<16x128xf32>
    %13 = math.log1p %8 : vector<16x128xf32>
    %14 = arith.addf %12, %13 : vector<16x128xf32>
    %cst_5 = arith.constant 0.000000e+00 : f32
    %15 = vector.broadcast %cst_5 : f32 to vector<16x128xf32>
    %16 = arith.subf %15, %3 : vector<16x128xf32>
    %cst_6 = arith.constant 2.000000e+00 : f32
    %17 = vector.broadcast %cst_6 : f32 to vector<16x128xf32>
    %18 = arith.mulf %4, %17 : vector<16x128xf32>
    %cst_7 = arith.constant 1.000000e+00 : f32
    %19 = vector.broadcast %cst_7 : f32 to vector<16x128xf32>
    %20 = arith.subf %18, %19 : vector<16x128xf32>
    %21 = arith.mulf %16, %20 : vector<16x128xf32>
    %cst_8 = arith.constant 0.000000e+00 : f32
    %22 = vector.broadcast %cst_8 : f32 to vector<16x128xf32>
    %23 = arith.cmpf oge, %21, %22 : vector<16x128xf32>
    %cst_9 = arith.constant 1.000000e+00 : f32
    %24 = vector.broadcast %cst_9 : f32 to vector<16x128xf32>
    %25 = arith.select %23, %24, %8 : vector<16x128xi1>, vector<16x128xf32>
    %cst_10 = arith.constant 1.000000e+00 : f32
    %26 = vector.broadcast %cst_10 : f32 to vector<16x128xf32>
    %27 = arith.addf %26, %8 : vector<16x128xf32>
    %28 = tpu.reciprocal %27 : vector<16x128xf32> -> vector<16x128xf32>
    %29 = arith.mulf %25, %28 : vector<16x128xf32>
    %30 = arith.mulf %29, %29 : vector<16x128xf32>
    %31 = arith.mulf %30, %14 : vector<16x128xf32>
    %c0_11 = arith.constant 0 : index
    %c0_12 = arith.constant 0 : index
    %32 = vector.load %arg3[%c0_11, %c0_12] : memref<8x128xf32, #tpu.memory_space<vmem>>, vector<8x128xf32>
    %33 = vector.shape_cast %31 : vector<16x128xf32> to vector<2x8x128xf32>
    %cst_13 = arith.constant dense<0.000000e+00> : vector<8x128xf32>
    %34 = vector.multi_reduction <add>, %33, %cst_13 [0] : vector<2x8x128xf32> to vector<8x128xf32>
    %35 = arith.addf %32, %34 : vector<8x128xf32>
    %c0_14 = arith.constant 0 : index
    %c0_15 = arith.constant 0 : index
    %36 = vector.load %arg3[%c0_14, %c0_15] : memref<8x128xf32, #tpu.memory_space<vmem>>, vector<8x128xf32>
    tpu.vector_store %arg3[%c0_14, %c0_15], %35 {strides = array<i32>} : memref<8x128xf32, #tpu.memory_space<vmem>>, vector<8x128xf32>,
    return
  }
  func.func @transform_0(%arg0: i32) -> (i32, i32) {
    %c0_i32 = arith.constant 0 : i32
    %c0_i32_0 = arith.constant 0 : i32
    return %arg0, %c0_i32 : i32, i32
  }
  func.func @transform_1(%arg0: i32) -> (i32, i32) {
    %c0_i32 = arith.constant 0 : i32
    %c0_i32_0 = arith.constant 0 : i32
    return %arg0, %c0_i32 : i32, i32
  }
  func.func @transform_2(%arg0: i32) -> (i32, i32) {
    %c0_i32 = arith.constant 0 : i32
    %c0_i32_0 = arith.constant 0 : i32
    %c0_i32_1 = arith.constant 0 : i32
    return %c0_i32, %c0_i32_0 : i32, i32
  }
}

</mosaic_0001>

<llo_original>
// kernel: tpu_custom_call.1
$region0: #{tpu_custom_call.1}
  #allocation0 [shape = 'u32[]', space=smem, size = 0x4, offset = 0x4, fixed_abs, tag = 'smem constant byte address 0x4 - core index']
  #allocation1 [shape = 'u32[72,128]{1,0:T(1,128)}', space=vmem, size = 0x9000, scoped, tag = 'internal scratch']
  %s0 = inlined_call_operand.hbm [shape: f32[16,128], index: 0, kind: input, shape index: {}]
  %s1 = inlined_call_operand.hbm [shape: f32[16,128], index: 1, kind: input, shape index: {}]
  %s2 = inlined_call_operand.hbm [shape: f32[8,128], index: 2, kind: output, shape index: {}]
  %s3 = sld [smem:[#allocation0]]
  $region30: #{tpu_custom_call.1} parent=0
    _
  %s5 = ssub.s32 1, %s3
  %s6 = scalar_select 0, %s5, %s3
  $region1: #{tpu_custom_call.1} parent=0
    #allocation2 [shape = 'u8[8192]{0}', space=vmem, size = 0x2000, scoped, tag = 'input window, operand 0, single buffered']
    #allocation3 [shape = 's32[1]{0}', space=sflag, size = 0x4, scoped, tag = 'scoped memory for tpu_custom_call.1']
    #allocation4 [shape = 's32[1]{0}', space=sflag, size = 0x4, scoped, tag = 'scoped memory for tpu_custom_call.1']
    #allocation5 [shape = 'u8[8192]{0}', space=vmem, size = 0x2000, scoped, tag = 'input window, operand 1, single buffered']
    #allocation6 [shape = 's32[1]{0}', space=sflag, size = 0x4, scoped, tag = 'scoped memory for tpu_custom_call.1']
    #allocation7 [shape = 'u8[4096]{0}', space=vmem, size = 0x1000, scoped, tag = 'output window, operand 0, single buffered']
    %7 = vsyncpa [#allocation3], 0
    %8 = vsyncpa [#allocation6], 0
    %9 = vsyncpa [#allocation4], 0
    // Predicated region
    $region2: #{tpu_custom_call.1} parent=1 // pred_check
      _
    $region3: #{tpu_custom_call.1} parent=1 // pred_check_branch
      %11 = sbr.rel (0) target = $region5
    $region4: #{tpu_custom_call.1} parent=1 // pred_region
      %13 = vsyncadd [#allocation3], 0
      %s14 = sshll.u32 %s0, 4
      %s15 = int_to_ptr.hbm [resolvable:$true] %s14
      %s16 = sshll.u32 [#allocation2], 4
      %s17 = int_to_ptr.vmem [resolvable:$true] %s16
      %22 = dma.hbm_to_vmem [thread:$0]  %s15, 256, %s17, [#allocation3], 128, 128, 8
    $region5: #{tpu_custom_call.1} parent=1 // pred_fallthru
      _
    // Predicated region
    $region6: #{tpu_custom_call.1} parent=1 // pred_check
      _
    $region7: #{tpu_custom_call.1} parent=1 // pred_check_branch
      %24 = sbr.rel (0) target = $region9
    $region8: #{tpu_custom_call.1} parent=1 // pred_region
      %26 = vsyncadd [#allocation6], 0
      %s27 = sshll.u32 %s1, 4
      %s28 = int_to_ptr.hbm [resolvable:$true] %s27
      %s29 = sshll.u32 [#allocation5], 4
      %s30 = int_to_ptr.vmem [resolvable:$true] %s29
      %35 = dma.hbm_to_vmem [thread:$0]  %s28, 256, %s30, [#allocation6], 128, 128, 8
    $region9: #{tpu_custom_call.1} parent=1 // pred_fallthru
      _
    // Predicated region
    $region10: #{tpu_custom_call.1} parent=1 // pred_check
      _
    $region11: #{tpu_custom_call.1} parent=1 // pred_check_branch
      %37 = sbr.rel (0) target = $region13
    $region12: #{tpu_custom_call.1} parent=1 // pred_region
      %39 = dma.done [#allocation3], 256
    $region13: #{tpu_custom_call.1} parent=1 // pred_fallthru
      _
    // Predicated region
    $region14: #{tpu_custom_call.1} parent=1 // pred_check
      _
    $region15: #{tpu_custom_call.1} parent=1 // pred_check_branch
      %41 = sbr.rel (0) target = $region17
    $region16: #{tpu_custom_call.1} parent=1 // pred_region
      %43 = dma.done [#allocation6], 256
    $region17: #{tpu_custom_call.1} parent=1 // pred_fallthru
      _
    %p44 = scmp.eq.s32.totalorder 0, 0
    // Predicated region
    $region18: #{tpu_custom_call.1} parent=1 // pred_check
      %p45 = pneg %p44
    $region19: #{tpu_custom_call.1} parent=1 // pred_check_branch
      %47 = sbr.rel (%p45) target = $region21
    $region20: #{tpu_custom_call.1} parent=1 // pred_region
      %48 = vst [vmem:[#allocation7] sm:$0xff] 0.0
    $region21: #{tpu_custom_call.1} parent=1 // pred_fallthru
      _
    %v49 = vld [vmem:[#allocation2] sm:$0xff]
    %v50 = vld [vmem:[#allocation2 + $0x8] sm:$0xff]
    %v51 = vld [vmem:[#allocation5] sm:$0xff]
    %v52 = vld [vmem:[#allocation5 + $0x8] sm:$0xff]
    %v53 = vand.u32 2147483647, %v49
    %v54 = vand.u32 2147483647, %v50
    %v55 = vsub.f32 0.0, %v53
    %v56 = vsub.f32 0.0, %v54
    %v57 = vmul.f32 %v55, 1.442695
    %v58 = vpow.pop %v57
    %v59 = vmul.f32 %v56, 1.442695
    %v60 = vpow.pop %v59
    %v61 = vmax.f32 %v49, 0.0
    %v62 = vmax.f32 %v50, 0.0
    %v63 = vmul.f32 %v49, %v51
    %v64 = vmul.f32 %v50, %v52
    %v65 = vsub.f32 %v61, %v63
    %v66 = vsub.f32 %v62, %v64
    %v67 = vadd.f32 %v58, 1.0
    %v68 = vlog2.pop %v67
    %v69 = vmul.f32 %v68, 0.6931472
    %v70 = vmul.f32 -0.5, %v58
    %v71 = vadd.f32 %v70, 1.0
    %v72 = vmul.f32 %v71, %v58
    %v73 = vand.u32 2147483647, %v58
    %vm74 = vcmp.lt.f32.partialorder %v73, 0.0004427343
    %v75 = vsel %vm74, %v72, %v69
    %v76 = vadd.f32 %v60, 1.0
    %v77 = vlog2.pop %v76
    %v78 = vmul.f32 %v77, 0.6931472
    %v79 = vmul.f32 -0.5, %v60
    %v80 = vadd.f32 %v79, 1.0
    %v81 = vmul.f32 %v80, %v60
    %v82 = vand.u32 2147483647, %v60
    %vm83 = vcmp.lt.f32.partialorder %v82, 0.0004427343
    %v84 = vsel %vm83, %v81, %v78
    %v85 = vadd.f32 %v65, %v75
    %v86 = vadd.f32 %v66, %v84
    %v87 = vsub.f32 0.0, %v49
    %v88 = vsub.f32 0.0, %v50
    %v89 = vmul.f32 %v51, 2.0
    %v90 = vmul.f32 %v52, 2.0
    %v91 = vsub.f32 %v89, 1.0
    %v92 = vsub.f32 %v90, 1.0
    %v93 = vmul.f32 %v87, %v91
    %v94 = vmul.f32 %v88, %v92
    %vm95 = vcmp.ge.f32.partialorder %v93, 0.0
    %vm96 = vcmp.ge.f32.partialorder %v94, 0.0
    %v97 = vsel %vm95, 1.0, %v58
    %v98 = vsel %vm96, 1.0, %v60
    %v99 = vadd.f32 %v58, 1.0
    %v100 = vadd.f32 %v60, 1.0
    %v101 = vrcp.pop %v99
    %v102 = vmul.f32 %v99, %v101
    %v103 = vsub.f32 1.0, %v102
    %v104 = vmul.f32 %v101, %v103
    %v105 = vadd.f32 %v101, %v104
    %vm106 = vweird.f32 %v99
    %vm107 = vweird.f32 %v101
    %vm108 = vmor %vm106, %vm107
    %v109 = vsel %vm108, %v101, %v105
    %v110 = vand.u32 2147483647, %v99
    %vm111 = vcmp.eq.f32.partialorder %v110, 8.507059e+37
    %v112 = vand.u32 %v99, 2147483648
    %v113 = vor.u32 1.1754944e-38, %v112
    %v114 = vsel %vm111, %v113, %v109
    %v115 = vrcp.pop %v100
    %v116 = vmul.f32 %v100, %v115
    %v117 = vsub.f32 1.0, %v116
    %v118 = vmul.f32 %v115, %v117
    %v119 = vadd.f32 %v115, %v118
    %vm120 = vweird.f32 %v100
    %vm121 = vweird.f32 %v115
    %vm122 = vmor %vm120, %vm121
    %v123 = vsel %vm122, %v115, %v119
    %v124 = vand.u32 2147483647, %v100
    %vm125 = vcmp.eq.f32.partialorder %v124, 8.507059e+37
    %v126 = vand.u32 %v100, 2147483648
    %v127 = vor.u32 1.1754944e-38, %v126
    %v128 = vsel %vm125, %v127, %v123
    %v129 = vmul.f32 %v97, %v114
    %v130 = vmul.f32 %v98, %v128
    %v131 = vmul.f32 %v129, %v129
    %v132 = vmul.f32 %v130, %v130
    %v133 = vmul.f32 %v131, %v85
    %v134 = vmul.f32 %v132, %v86
    %v135 = vld [vmem:[#allocation7] sm:$0xff]
    %v136 = vadd.f32 %v133, %v134
    %v137 = vadd.f32 %v135, %v136
    %138 = vst [vmem:[#allocation7] sm:$0xff] %v137
    // Predicated region
    $region22: #{tpu_custom_call.1} parent=1 // pred_check
      _
    $region23: #{tpu_custom_call.1} parent=1 // pred_check_branch
      %140 = sbr.rel (0) target = $region25
    $region24: #{tpu_custom_call.1} parent=1 // pred_region
      %142 = vsyncadd [#allocation4], 0
      %s144 = sshll.u32 [#allocation7], 4
      %s145 = int_to_ptr.vmem [resolvable:$true] %s144
      %s146 = sshll.u32 %s2, 4
      %s147 = int_to_ptr.hbm [resolvable:$true] %s146
      %149 = dma.vmem_to_hbm [thread:$0]  %s145, 128, %s147, [#allocation4]
    $region25: #{tpu_custom_call.1} parent=1 // pred_fallthru
      _
    // Predicated region
    $region26: #{tpu_custom_call.1} parent=1 // pred_check
      _
    $region27: #{tpu_custom_call.1} parent=1 // pred_check_branch
      %151 = sbr.rel (0) target = $region29
    $region28: #{tpu_custom_call.1} parent=1 // pred_region
      %153 = dma.done [#allocation4], 128
    $region29: #{tpu_custom_call.1} parent=1 // pred_fallthru
      _
    %154 = vsyncpa [#allocation3], 1
    %155 = vsyncpa [#allocation6], 1
    %156 = vsyncpa [#allocation4], 1

</llo_original>
